<compile_context>
chip_gen: v5e
topology: v5e:2x2
jax: 0.10.0
libtpu: 0.0.40
codegen_flags: <defaults>
</compile_context>

<pallas_src>
import functools

import jax
import jax.numpy as jnp
from jax import lax
from jax.experimental import pallas as pl
from jax.experimental.pallas import tpu as pltpu

LANES = 128
SUBLANES = 8
MAX_TILE_ROWS = 8192                 # 8192 * 128 * 4 B = 4 MiB per f32 input tile
VMEM_LIMIT_BYTES = 32 * 1024 * 1024


def _tensorcore_count() -> int:
    """Best-effort TensorCores-per-device count (falls back to 2 = safe default)."""
    try:
        info = pltpu.get_tpu_info()
    except Exception:
        return 2
    for name in ("num_cores", "core_count", "num_tensorcores",
                 "tensorcore_count", "num_cores_per_chip"):
        v = getattr(info, name, None)
        if isinstance(v, int) and v > 0:
            return v
    return 2


def _bce_sum(x, e):
    """Plain-JAX BCE-with-logits sum over all elements (tail / tiny fallback)."""
    x = x.astype(jnp.float32)
    e = e.astype(jnp.float32)
    y = ((x + e) > 0.7).astype(jnp.float32)
    loss = jnp.maximum(x, 0.0) - x * y + jnp.log1p(jnp.exp(-jnp.abs(x)))
    return jnp.sum(loss)


def _bce_seg_kernel(seg_ref, edge_ref, out_ref, *,
                    blocks_per_p, block_elems, n_valid, needs_mask):
    """One (tile_rows, 128) tile of BCE-with-logits, accumulated into (8, 128)."""
    p = pl.program_id(0)
    i = pl.program_id(1)

    @pl.when(i == 0)
    def _():
        out_ref[...] = jnp.zeros_like(out_ref)

    x = seg_ref[...].astype(jnp.float32)      # logits
    e = edge_ref[...].astype(jnp.float32)

    # seg_label = (seg + edge > 0.7).float()   (detach is a no-op in forward)
    y = ((x + e) > 0.7).astype(jnp.float32)

    # Numerically stable BCE-with-logits (matches PyTorch):
    #   loss = max(x, 0) - x*y + log(1 + exp(-|x|))
    loss = jnp.maximum(x, 0.0) - x * y + jnp.log1p(jnp.exp(-jnp.abs(x)))

    def accumulate(v):
        # Fold (tile_rows, 128) onto the (8, 128) accumulator with pure VPU adds;
        # the reshape matches the native (8, 128) vreg tiling (layout-free).
        out_ref[...] += v.reshape(-1, SUBLANES, LANES).sum(axis=0)

    if not needs_mask:
        accumulate(loss)
    else:
        # TODO(synk): int32 offsets overflow for tensors with > 2**31 elements.
        bi = p * blocks_per_p + i                 # logical (unclamped) block index
        remaining = n_valid - bi * block_elems    # valid elements in this block

        @pl.when(remaining >= block_elems)
        def _():                                  # fully-valid block: no mask work
            accumulate(loss)

        @pl.when(remaining < block_elems)
        def _():                                  # partial / fully-OOB block
            row = lax.broadcasted_iota(jnp.int32, loss.shape, 0)
            col = lax.broadcasted_iota(jnp.int32, loss.shape, 1)
            rel = row * LANES + col
            accumulate(jnp.where(rel < remaining, loss, 0.0))


@functools.partial(jax.jit, static_argnames=("max_tile_rows",))
def segmentation_regular(seg, edge, *, max_tile_rows=MAX_TILE_ROWS):
    """Pallas implementation of SegmentationRegular.forward(seg, edge) -> scalar."""
    assert seg.shape == edge.shape
    n_elems = seg.size
    seg_flat = seg.reshape(-1)
    edge_flat = edge.reshape(-1)

    # Lane-aligned bulk goes through the kernel; the < 128-element ragged tail
    # is reduced in plain JAX so we never pad (and copy) the whole tensor.
    rem = n_elems % LANES
    n_bulk = n_elems - rem
    rows_bulk = n_bulk // LANES

    # Sublane granularity by dtype packing (f32: 8, bf16: 16, int8/fp8: 32).
    min_itemsize = min(jnp.dtype(seg.dtype).itemsize, jnp.dtype(edge.dtype).itemsize)
    sub_mult = SUBLANES * max(1, 4 // int(min_itemsize))

    if rows_bulk < sub_mult:
        # Tiny input: not worth a kernel launch (also keeps block <= array dim).
        return _bce_sum(seg_flat, edge_flat) / jnp.float32(n_elems)

    extra = jnp.float32(0.0)
    if rem > 0:
        extra = _bce_sum(seg_flat[n_bulk:], edge_flat[n_bulk:])
        # TODO(synk): this bulk slice costs one HBM copy; only hit when n % 128 != 0.
        seg2 = seg_flat[:n_bulk].reshape(rows_bulk, LANES)
        edge2 = edge_flat[:n_bulk].reshape(rows_bulk, LANES)
    else:
        # Pure metadata reshape — zero extra HBM traffic.
        seg2 = seg_flat.reshape(rows_bulk, LANES)
        edge2 = edge_flat.reshape(rows_bulk, LANES)

    # Tile geometry (all static Python ints).  Floor to sub_mult so blocks never
    # exceed the array's sublane extent; the last block may be partial (clipped
    # DMA + in-kernel mask).
    max_rows = max(sub_mult, (max_tile_rows // sub_mult) * sub_mult)
    tile_rows = min(max_rows, (rows_bulk // sub_mult) * sub_mult)
    block_elems = tile_rows * LANES
    num_blocks = pl.cdiv(rows_bulk, tile_rows)

    # Only emit the parallel shard axis on multi-TensorCore chips (v7x).
    n_parallel = 2 if (num_blocks >= 2 and _tensorcore_count() >= 2) else 1
    blocks_per_p = pl.cdiv(num_blocks, n_parallel)
    total_blocks = n_parallel * blocks_per_p
    needs_mask = total_blocks * block_elems > n_bulk

    if total_blocks > num_blocks:
        # Uneven split: clamp out-of-range logical blocks onto the last real
        # block (their contribution is fully masked in-kernel).
        def in_index(p, i):
            return (jnp.minimum(p * blocks_per_p + i, num_blocks - 1), 0)
    else:
        def in_index(p, i):
            return (p * blocks_per_p + i, 0)

    in_spec = pl.BlockSpec((tile_rows, LANES), in_index)
    out_spec = pl.BlockSpec((SUBLANES, LANES), lambda p, i: (p, 0))

    kernel = functools.partial(
        _bce_seg_kernel,
        blocks_per_p=blocks_per_p,
        block_elems=block_elems,
        n_valid=n_bulk,
        needs_mask=needs_mask,
    )

    partials = pl.pallas_call(
        kernel,
        out_shape=jax.ShapeDtypeStruct((n_parallel * SUBLANES, LANES), jnp.float32),
        grid_spec=pltpu.PrefetchScalarGridSpec(
            num_scalar_prefetch=0,
            grid=(n_parallel, blocks_per_p),
            in_specs=[in_spec, in_spec],
            out_specs=out_spec,
        ),
        compiler_params=pltpu.CompilerParams(
            # TODO(synk): on v7x confirm the leading axis truly shards across both
            # TensorCores; switch to pltpu.CORE_PARALLEL / pl.core_map if not.
            dimension_semantics=("parallel", "arbitrary"),
            vmem_limit_bytes=VMEM_LIMIT_BYTES,
        ),
    )(seg2, edge2)

    # Mean reduction (F.binary_cross_entropy_with_logits default).
    # TODO(synk): forward-only (no custom VJP), matching the module's detach path.
    return (jnp.sum(partials) + extra) / jnp.float32(n_elems)


def _reference(seg, edge):
    """Pure-JAX reference for validation."""
    x = seg.astype(jnp.float32)
    y = ((x + edge.astype(jnp.float32)) > 0.7).astype(jnp.float32)
    loss = jnp.maximum(x, 0.0) - x * y + jnp.log1p(jnp.exp(-jnp.abs(x)))
    return jnp.mean(loss)


if __name__ == "__main__":
    key = jax.random.PRNGKey(0)

    # 1) Small segmentation map (lane-aligned, single block, no masking path).
    k1, k2 = jax.random.split(key)
    seg = jax.random.normal(k1, (2, 4, 16, 16), dtype=jnp.float32)
    edge = jax.random.normal(k2, (2, 4, 16, 16), dtype=jnp.float32)
    out = jax.block_until_ready(segmentation_regular(seg, edge))
    ref = _reference(seg, edge)
    assert jnp.allclose(out, ref, rtol=3e-5, atol=1e-6), (out, ref)

    # 2) Ragged shape: plain-JAX tail + clipped partial final block (in-kernel mask).
    k3, k4 = jax.random.split(k2)
    seg_r = jax.random.normal(k3, (2, 3, 17, 19), dtype=jnp.float32)
    edge_r = jax.random.normal(k4, (2, 3, 17, 19), dtype=jnp.float32)
    out_r = jax.block_until_ready(segmentation_regular(seg_r, edge_r))
    ref_r = _reference(seg_r, edge_r)
    assert jnp.allclose(out_r, ref_r, rtol=3e-5, atol=1e-6), (out_r, ref_r)

    # 3) Multi-block shape with a small tile: exercises the parallel axis, the
    #    partial final block, and (on 2-TC chips) the clamped OOB block.
    k5, k6 = jax.random.split(k4)
    seg_b = jax.random.normal(k5, (4, 4, 120, 160), dtype=jnp.float32)
    edge_b = jax.random.normal(k6, (4, 4, 120, 160), dtype=jnp.float32)
    out_b = jax.block_until_ready(segmentation_regular(seg_b, edge_b, max_tile_rows=512))
    ref_b = _reference(seg_b, edge_b)
    assert jnp.allclose(out_b, ref_b, rtol=3e-5, atol=1e-6), (out_b, ref_b)

    # 4) bf16 inputs stay bf16 in HBM (16-row sublane tiling, halves HBM traffic).
    seg_h = seg.astype(jnp.bfloat16)
    edge_h = edge.astype(jnp.bfloat16)
    out_h = jax.block_until_ready(segmentation_regular(seg_h, edge_h))
    ref_h = _reference(seg_h, edge_h)
    assert jnp.allclose(out_h, ref_h, rtol=1e-4, atol=1e-5), (out_h, ref_h)

    print("KERNEL_OK")
</pallas_src>

<mosaic_0001>
module attributes {stable_mosaic.version = 11 : i64} {
  func.func @_bce_seg_kernel(%arg0: i32, %arg1: i32, %arg2: memref<16x128xf32, #tpu.memory_space<vmem>>, %arg3: memref<16x128xf32, #tpu.memory_space<vmem>>, %arg4: memref<8x128xf32, #tpu.memory_space<vmem>>) attributes {dimension_semantics = [#tpu.dimension_semantics<parallel>, #tpu.dimension_semantics<arbitrary>], iteration_bounds = array<i64: 1, 1>, scalar_prefetch = 0 : i64, scratch_operands = 0 : i64, tpu.core_type = #tpu.core_type<tc>, window_params = [{transform_indices = @transform_0, window_bounds = array<i64: 16, 128>}, {transform_indices = @transform_1, window_bounds = array<i64: 16, 128>}, {transform_indices = @transform_2, window_bounds = array<i64: 8, 128>}]} {
    %c0_i32 = arith.constant 0 : i32
    %0 = arith.cmpi eq, %arg1, %c0_i32 : i32
    %1 = arith.extui %0 : i1 to i32
    %c0_i32_0 = arith.constant 0 : i32
    %2 = arith.cmpi ne, %1, %c0_i32_0 : i32
    scf.if %2 {
      %cst_11 = arith.constant 0.000000e+00 : f32
      %25 = vector.broadcast %cst_11 : f32 to vector<8x128xf32>
      %c0_12 = arith.constant 0 : index
      %c0_13 = arith.constant 0 : index
      %26 = vector.load %arg4[%c0_12, %c0_13] : memref<8x128xf32, #tpu.memory_space<vmem>>, vector<8x128xf32>
      tpu.vector_store %arg4[%c0_12, %c0_13], %25 {strides = array<i32>} : memref<8x128xf32, #tpu.memory_space<vmem>>, vector<8x128xf32>,
    } else {
    }
    %c0 = arith.constant 0 : index
    %c0_1 = arith.constant 0 : index
    %3 = vector.load %arg2[%c0, %c0_1] : memref<16x128xf32, #tpu.memory_space<vmem>>, vector<16x128xf32>
    %c0_2 = arith.constant 0 : index
    %c0_3 = arith.constant 0 : index
    %4 = vector.load %arg3[%c0_2, %c0_3] : memref<16x128xf32, #tpu.memory_space<vmem>>, vector<16x128xf32>
    %5 = arith.addf %3, %4 : vector<16x128xf32>
    %cst = arith.constant 0.699999988 : f32
    %6 = vector.broadcast %cst : f32 to vector<16x128xf32>
    %7 = arith.cmpf ogt, %5, %6 : vector<16x128xf32>
    %8 = arith.extui %7 : vector<16x128xi1> to vector<16x128xi32>
    %9 = arith.sitofp %8 : vector<16x128xi32> to vector<16x128xf32>
    %cst_4 = arith.constant 0.000000e+00 : f32
    %10 = vector.broadcast %cst_4 : f32 to vector<16x128xf32>
    %11 = arith.maximumf %3, %10 : vector<16x128xf32>
    %12 = arith.mulf %3, %9 : vector<16x128xf32>
    %13 = arith.subf %11, %12 : vector<16x128xf32>
    %14 = math.absf %3 : vector<16x128xf32>
    %cst_5 = arith.constant 0.000000e+00 : f32
    %15 = vector.broadcast %cst_5 : f32 to vector<16x128xf32>
    %16 = arith.subf %15, %14 : vector<16x128xf32>
    %17 = math.exp %16 : vector<16x128xf32>
    %18 = math.log1p %17 : vector<16x128xf32>
    %19 = arith.addf %13, %18 : vector<16x128xf32>
    %c0_6 = arith.constant 0 : index
    %c0_7 = arith.constant 0 : index
    %20 = vector.load %arg4[%c0_6, %c0_7] : memref<8x128xf32, #tpu.memory_space<vmem>>, vector<8x128xf32>
    %21 = vector.shape_cast %19 : vector<16x128xf32> to vector<2x8x128xf32>
    %cst_8 = arith.constant dense<0.000000e+00> : vector<8x128xf32>
    %22 = vector.multi_reduction <add>, %21, %cst_8 [0] : vector<2x8x128xf32> to vector<8x128xf32>
    %23 = arith.addf %20, %22 : vector<8x128xf32>
    %c0_9 = arith.constant 0 : index
    %c0_10 = arith.constant 0 : index
    %24 = vector.load %arg4[%c0_9, %c0_10] : memref<8x128xf32, #tpu.memory_space<vmem>>, vector<8x128xf32>
    tpu.vector_store %arg4[%c0_9, %c0_10], %23 {strides = array<i32>} : memref<8x128xf32, #tpu.memory_space<vmem>>, vector<8x128xf32>,
    return
  }
  func.func @transform_0(%arg0: i32, %arg1: i32) -> (i32, i32) {
    %c1_i32 = arith.constant 1 : i32
    %0 = arith.muli %arg0, %c1_i32 : i32
    %1 = arith.addi %0, %arg1 : i32
    %c0_i32 = arith.constant 0 : i32
    %c0_i32_0 = arith.constant 0 : i32
    return %1, %c0_i32 : i32, i32
  }
  func.func @transform_1(%arg0: i32, %arg1: i32) -> (i32, i32) {
    %c1_i32 = arith.constant 1 : i32
    %0 = arith.muli %arg0, %c1_i32 : i32
    %1 = arith.addi %0, %arg1 : i32
    %c0_i32 = arith.constant 0 : i32
    %c0_i32_0 = arith.constant 0 : i32
    return %1, %c0_i32 : i32, i32
  }
  func.func @transform_2(%arg0: i32, %arg1: i32) -> (i32, i32) {
    %c0_i32 = arith.constant 0 : i32
    %c0_i32_0 = arith.constant 0 : i32
    return %arg0, %c0_i32 : i32, i32
  }
}

</mosaic_0001>

<llo_original>
// kernel: segmentation_regular.1
$region0: #{segmentation_regular.1}
  #allocation0 [shape = 'u32[]', space=smem, size = 0x4, offset = 0x4, fixed_abs, tag = 'smem constant byte address 0x4 - core index']
  #allocation1 [shape = 'u32[72,128]{1,0:T(1,128)}', space=vmem, size = 0x9000, scoped, tag = 'internal scratch']
  %s0 = inlined_call_operand.vmem [shape: f32[16,128], index: 0, kind: input, shape index: {}]
  %s1 = inlined_call_operand.vmem [shape: f32[16,128], index: 1, kind: input, shape index: {}]
  %s2 = inlined_call_operand.vmem [shape: f32[8,128], index: 2, kind: output, shape index: {}]
  %s3 = sld [smem:[#allocation0]]
  $region22: #{segmentation_regular.1} parent=0
    _
  %s5 = ssub.s32 1, %s3
  %s6 = scalar_select 0, %s5, %s3
  // Predicated region
  $region2: #{segmentation_regular.1} parent=0 // pred_check
    _
  $region3: #{segmentation_regular.1} parent=0 // pred_check_branch
    %8 = sbr.rel (0) target = $region5
  $region4: #{segmentation_regular.1} parent=0 // pred_region
    %s9 = sadd.s32 0, 0
    %s10 = smul.u32 2, %s9
    %p11 = scmp.lt.s32.totalorder %s10, 1
    %s12 = scalar_select %p11, %s10, 1
    %s13 = smul.addr %s12, 8
    %s14 = scalar_lea.vmem %s0, %s13
    %s15 = sadd.s32 0, 0
    %s16 = smul.u32 2, %s15
  $region5: #{segmentation_regular.1} parent=0 // pred_fallthru
    _
  // Predicated region
  $region6: #{segmentation_regular.1} parent=0 // pred_check
    _
  $region7: #{segmentation_regular.1} parent=0 // pred_check_branch
    %18 = sbr.rel (0) target = $region9
  $region8: #{segmentation_regular.1} parent=0 // pred_region
    %s19 = sadd.s32 0, 0
    %s20 = smul.u32 2, %s19
    %p21 = scmp.lt.s32.totalorder %s20, 1
    %s22 = scalar_select %p21, %s20, 1
    %s23 = smul.addr %s22, 8
    %s24 = scalar_lea.vmem %s1, %s23
    %s25 = sadd.s32 0, 0
    %s26 = smul.u32 2, %s25
  $region9: #{segmentation_regular.1} parent=0 // pred_fallthru
    _
  %s27 = sadd.s32 0, 0
  %s28 = smul.u32 2, %s27
  %p29 = scmp.lt.s32.totalorder %s28, 1
  %s30 = scalar_select %p29, %s28, 1
  %s31 = smul.addr %s30, 8
  %s32 = scalar_lea.vmem %s0, %s31
  %s33 = sadd.s32 0, 0
  %s34 = smul.u32 2, %s33
  %p35 = scmp.lt.s32.totalorder %s34, 1
  %s36 = scalar_select %p35, %s34, 1
  %s37 = smul.addr %s36, 8
  %s38 = scalar_lea.vmem %s1, %s37
  %s39 = sadd.s32 0, 0
  %s40 = smul.u32 2, %s39
  %p41 = scmp.lt.s32.totalorder %s40, 1
  %s42 = scalar_select %p41, %s40, 1
  %s43 = smul.addr %s42, 8
  %s44 = scalar_lea.vmem %s0, %s43
  %s45 = sadd.s32 0, 0
  %s46 = smul.u32 2, %s45
  %s47 = sadd.s32 0, 0
  %s48 = smul.u32 2, %s47
  %p49 = scmp.lt.s32.totalorder %s48, 1
  %s50 = scalar_select %p49, %s48, 1
  %s51 = smul.addr %s50, 8
  %s52 = scalar_lea.vmem %s1, %s51
  %s53 = sadd.s32 0, 0
  %s54 = smul.u32 2, %s53
  %p55 = scmp.eq.s32.totalorder 0, 0
  // Predicated region
  $region10: #{segmentation_regular.1} parent=0 // pred_check
    %p56 = pneg %p55
  $region11: #{segmentation_regular.1} parent=0 // pred_check_branch
    %58 = sbr.rel (%p56) target = $region13
  $region12: #{segmentation_regular.1} parent=0 // pred_region
    %59 = vst [vmem:[%s2] sm:$0xff] 0.0
  $region13: #{segmentation_regular.1} parent=0 // pred_fallthru
    _
  %v60 = vld [vmem:[%s44] sm:$0xff]
  %v61 = vld [vmem:[%s44 + $0x8] sm:$0xff]
  %v62 = vld [vmem:[%s52] sm:$0xff]
  %v63 = vld [vmem:[%s52 + $0x8] sm:$0xff]
  %v64 = vadd.f32 %v60, %v62
  %v65 = vadd.f32 %v61, %v63
  %vm66 = vcmp.gt.f32.partialorder %v64, 0.7
  %vm67 = vcmp.gt.f32.partialorder %v65, 0.7
  %v68 = vsel %vm66, 1, 0
  %v69 = vsel %vm67, 1, 0
  %v70 = vcvt.s32.f32 %v68
  %v71 = vcvt.s32.f32 %v69
  %v72 = vmax.f32 %v60, 0.0
  %v73 = vmax.f32 %v61, 0.0
  %v74 = vmul.f32 %v60, %v70
  %v75 = vmul.f32 %v61, %v71
  %v76 = vsub.f32 %v72, %v74
  %v77 = vsub.f32 %v73, %v75
  %v78 = vand.u32 2147483647, %v60
  %v79 = vand.u32 2147483647, %v61
  %v80 = vsub.f32 0.0, %v78
  %v81 = vsub.f32 0.0, %v79
  %v82 = vmul.f32 %v80, 1.442695
  %v83 = vpow.pop %v82
  %v84 = vmul.f32 %v81, 1.442695
  %v85 = vpow.pop %v84
  %v86 = vadd.f32 %v83, 1.0
  %v87 = vlog2.pop %v86
  %v88 = vmul.f32 %v87, 0.6931472
  %v89 = vmul.f32 -0.5, %v83
  %v90 = vadd.f32 %v89, 1.0
  %v91 = vmul.f32 %v90, %v83
  %v92 = vand.u32 2147483647, %v83
  %vm93 = vcmp.lt.f32.partialorder %v92, 0.0004427343
  %v94 = vsel %vm93, %v91, %v88
  %v95 = vadd.f32 %v85, 1.0
  %v96 = vlog2.pop %v95
  %v97 = vmul.f32 %v96, 0.6931472
  %v98 = vmul.f32 -0.5, %v85
  %v99 = vadd.f32 %v98, 1.0
  %v100 = vmul.f32 %v99, %v85
  %v101 = vand.u32 2147483647, %v85
  %vm102 = vcmp.lt.f32.partialorder %v101, 0.0004427343
  %v103 = vsel %vm102, %v100, %v97
  %v104 = vadd.f32 %v76, %v94
  %v105 = vadd.f32 %v77, %v103
  %v106 = vld [vmem:[%s2] sm:$0xff]
  %v107 = vadd.f32 %v104, %v105
  %v108 = vadd.f32 %v106, %v107
  %109 = vst [vmem:[%s2] sm:$0xff] %v108
  // Predicated region
  $region14: #{segmentation_regular.1} parent=0 // pred_check
    _
  $region15: #{segmentation_regular.1} parent=0 // pred_check_branch
    %111 = sbr.rel (0) target = $region17
  $region16: #{segmentation_regular.1} parent=0 // pred_region
    _
  $region17: #{segmentation_regular.1} parent=0 // pred_fallthru
    _
  // Predicated region
  $region18: #{segmentation_regular.1} parent=0 // pred_check
    _
  $region19: #{segmentation_regular.1} parent=0 // pred_check_branch
    %113 = sbr.rel (0) target = $region21
  $region20: #{segmentation_regular.1} parent=0 // pred_region
    _
  $region21: #{segmentation_regular.1} parent=0 // pred_fallthru
    _

</llo_original>
